<compile_context>
chip_gen: v6e
topology: v6e:2x2x1
jax: 0.10.0
libtpu: 0.0.40
codegen_flags: <defaults>
</compile_context>

<pallas_src>
import functools
import math

import jax
import jax.numpy as jnp
from jax.experimental import pallas as pl
from jax.experimental.pallas import tpu as pltpu

N_ACTIONS = 3      # ChangeLaneEnv.N_ACTIONS (lane-left / keep / lane-right)
BN_EPS = 1e-5
LANE = 128         # TPU lane width: every feature dim padded to this
SUBLANE = 8        # f32 sublane width: batch padded to a multiple of this
TILE_B = 512       # batch tile for large-B serving path

# Concrete LinearDQNConfig for this synthetic kernel.
CONFIG = dict(
    out_features=[32, 32],
    use_biases=[True, True],
    use_batch_norms=[True, False],
    use_activations=[True, True],
    activation_type="relu",   # 'relu' | 'tanh' | 'none'
)


def _round_up(x, m):
    return (x + m - 1) // m * m


# --------------------------------------------------------------------------
# Parameter construction (mimics PyTorch defaults) and BN-folding / packing.
# --------------------------------------------------------------------------
def init_params(key, in_features, config):
    """Raw per-layer params, PyTorch-style init.

    Linear: U(-1/sqrt(fan_in), 1/sqrt(fan_in)) for W and b.
    BatchNorm1d (eval): gamma=1, beta=0, running_mean=0, running_var=1.
    Returns a list of layer dicts: {'w','b','bn','act'}.
    """
    layers = []
    fan_in = in_features
    act_type = config["activation_type"]
    for out_f, use_bias, use_bn, use_act in zip(
            config["out_features"], config["use_biases"],
            config["use_batch_norms"], config["use_activations"]):
        key, kw, kb = jax.random.split(key, 3)
        bound = 1.0 / math.sqrt(fan_in)
        w = jax.random.uniform(kw, (fan_in, out_f), jnp.float32, -bound, bound)
        b = (jax.random.uniform(kb, (out_f,), jnp.float32, -bound, bound)
             if use_bias else None)
        bn = ((jnp.ones((out_f,), jnp.float32),    # gamma
               jnp.zeros((out_f,), jnp.float32),   # beta
               jnp.zeros((out_f,), jnp.float32),   # running_mean
               jnp.ones((out_f,), jnp.float32))    # running_var
              if use_bn else None)
        act = act_type if (act_type != "none" and use_act) else "none"
        layers.append(dict(w=w, b=b, bn=bn, act=act))
        fan_in = out_f

    # Final LazyLinear(N_ACTIONS) — bias=True by default, no BN / act.
    key, kw, kb = jax.random.split(key, 3)
    bound = 1.0 / math.sqrt(fan_in)
    layers.append(dict(
        w=jax.random.uniform(kw, (fan_in, N_ACTIONS), jnp.float32,
                             -bound, bound),
        b=jax.random.uniform(kb, (N_ACTIONS,), jnp.float32, -bound, bound),
        bn=None, act="none"))
    return layers


def pack_params(layers, in_features):
    """Fold eval-mode BN into W/b and pack into two lane-dense slabs.

    Returns (w_slab (sum_in_pad, 128) f32, b_slab (8, 128) f32,
             layer_meta tuple of (row_offset, in_pad, act)).
    """
    in_dims = [in_features] + [l["w"].shape[1] for l in layers[:-1]]
    w_blocks, b_rows, layer_meta = [], [], []
    offset = 0
    for layer, in_f in zip(layers, in_dims):
        out_f = layer["w"].shape[1]
        assert out_f <= LANE, "kernel assumes each layer output fits 128 lanes"
        in_pad = _round_up(in_f, LANE)

        w = layer["w"]
        b = layer["b"] if layer["b"] is not None else jnp.zeros(
            (out_f,), jnp.float32)
        if layer["bn"] is not None:
            gamma, beta, mean, var = layer["bn"]
            scale = gamma * jax.lax.rsqrt(var + BN_EPS)
            w = w * scale[None, :]                 # W' = W * scale
            b = (b - mean) * scale + beta          # b' = (b-mean)*scale + beta

        w_pad = jnp.zeros((in_pad, LANE), jnp.float32).at[:in_f, :out_f].set(w)
        b_pad = jnp.zeros((LANE,), jnp.float32).at[:out_f].set(b)
        w_blocks.append(w_pad)
        b_rows.append(b_pad)
        layer_meta.append((offset, in_pad, layer["act"]))
        offset += in_pad

    w_slab = jnp.concatenate(w_blocks, axis=0)     # (sum_in_pad, 128)
    n_layers = len(layers)
    b_slab = jnp.zeros((_round_up(n_layers, SUBLANE), LANE), jnp.float32)
    b_slab = b_slab.at[:n_layers].set(jnp.stack(b_rows, axis=0))
    return w_slab, b_slab, tuple(layer_meta)


# --------------------------------------------------------------------------
# Fused MLP kernel: (TILE_B, 128) x -> chained 128x128 matmuls -> (TILE_B, 128)
# --------------------------------------------------------------------------
def _mlp_kernel(layer_meta, x_ref, w_ref, b_ref, out_ref):
    h = x_ref[...].astype(jnp.float32)                     # (TILE_B, 128)
    for i, (offset, in_pad, act) in enumerate(layer_meta):
        w = w_ref[pl.ds(offset, in_pad), :]                # static slice, free
        h = jnp.dot(h, w, preferred_element_type=jnp.float32)
        h = h + b_ref[pl.ds(i, 1), :]                      # (1,128) broadcast
        if act == "relu":
            h = jnp.maximum(h, 0.0)
        elif act == "tanh":
            h = jnp.tanh(h)
    out_ref[...] = h.astype(out_ref.dtype)


def linear_dqn_forward(x, w_slab, b_slab, layer_meta):
    """x: (B, *feature_dims) -> (B, N_ACTIONS) float32."""
    b = x.shape[0]
    x_flat = x.reshape(b, -1).astype(jnp.float32)          # nn.Flatten()
    d_in = x_flat.shape[1]
    d_pad = layer_meta[0][1]                               # padded input width

    # Pick a batch tile and pad the batch to a multiple of it (lane/sublane
    # padded lanes are zero, so the extra rows/cols are inert and sliced off).
    b_min = _round_up(b, SUBLANE)
    tb = b_min if b_min <= TILE_B else TILE_B
    b_pad = _round_up(b, tb)

    x_pad = jnp.zeros((b_pad, d_pad), jnp.float32).at[:b, :d_in].set(x_flat)

    kernel = functools.partial(_mlp_kernel, layer_meta)
    out = pl.pallas_call(
        kernel,
        out_shape=jax.ShapeDtypeStruct((b_pad, LANE), jnp.float32),
        grid=(b_pad // tb,),
        in_specs=[
            pl.BlockSpec((tb, d_pad), lambda i: (i, 0)),       # x: pipelined
            pl.BlockSpec(w_slab.shape, lambda i: (0, 0)),      # weights: resident
            pl.BlockSpec(b_slab.shape, lambda i: (0, 0)),      # biases: resident
        ],
        out_specs=pl.BlockSpec((tb, LANE), lambda i: (i, 0)),  # lane-dense out
        compiler_params=pltpu.CompilerParams(
            dimension_semantics=("parallel",)),
    )(x_pad, w_slab, b_slab)
    return out[:b, :N_ACTIONS]


# --------------------------------------------------------------------------
# Pure-JAX reference with the ORIGINAL (unfolded) semantics.
# --------------------------------------------------------------------------
def reference_forward(x, layers):
    h = x.reshape(x.shape[0], -1).astype(jnp.float32)
    for layer in layers:
        h = h @ layer["w"]
        if layer["b"] is not None:
            h = h + layer["b"]
        if layer["bn"] is not None:
            gamma, beta, mean, var = layer["bn"]
            h = (h - mean) / jnp.sqrt(var + BN_EPS) * gamma + beta
        if layer["act"] == "relu":
            h = jnp.maximum(h, 0.0)
        elif layer["act"] == "tanh":
            h = jnp.tanh(h)
    return h


if __name__ == "__main__":
    key = jax.random.PRNGKey(0)
    k_x, k_p = jax.random.split(key)

    # Small state batch: batch=2, feature grid 4x16 -> 64 flattened features.
    x = jax.random.normal(k_x, (2, 4, 16), jnp.float32)
    in_features = 4 * 16

    layers = init_params(k_p, in_features, CONFIG)
    w_slab, b_slab, layer_meta = pack_params(layers, in_features)

    out = linear_dqn_forward(x, w_slab, b_slab, layer_meta)
    out = jax.block_until_ready(out)

    ref = reference_forward(x, layers)
    assert out.shape == (2, N_ACTIONS)
    assert jnp.allclose(out, ref, atol=1e-5, rtol=1e-5)

    print("KERNEL_OK")
</pallas_src>

<mosaic_0001>
module attributes {stable_mosaic.version = 11 : i64} {
  func.func @_mlp_kernel(%arg0: i32, %arg1: memref<8x128xf32, #tpu.memory_space<vmem>>, %arg2: memref<384x128xf32, #tpu.memory_space<vmem>>, %arg3: memref<8x128xf32, #tpu.memory_space<vmem>>, %arg4: memref<8x128xf32, #tpu.memory_space<vmem>>) attributes {dimension_semantics = [#tpu.dimension_semantics<parallel>], iteration_bounds = array<i64: 1>, scalar_prefetch = 0 : i64, scratch_operands = 0 : i64, tpu.core_type = #tpu.core_type<tc>, window_params = [{transform_indices = @transform_0, window_bounds = array<i64: 8, 128>}, {pipeline_mode = #tpu.pipeline_mode<synchronous>, transform_indices = @transform_1, window_bounds = array<i64: 384, 128>}, {pipeline_mode = #tpu.pipeline_mode<synchronous>, transform_indices = @transform_2, window_bounds = array<i64: 8, 128>}, {transform_indices = @transform_3, window_bounds = array<i64: 8, 128>}]} {
    %c0 = arith.constant 0 : index
    %c0_0 = arith.constant 0 : index
    %0 = vector.load %arg1[%c0, %c0_0] : memref<8x128xf32, #tpu.memory_space<vmem>>, vector<8x128xf32>
    %c0_1 = arith.constant 0 : index
    %c0_2 = arith.constant 0 : index
    %1 = vector.load %arg2[%c0_1, %c0_2] : memref<384x128xf32, #tpu.memory_space<vmem>>, vector<128x128xf32>
    %cst = arith.constant dense<0.000000e+00> : vector<8x128xf32>
    %2 = tpu.matmul %0, %1, %cst {dimension_numbers = #tpu.dot_dimension_numbers<[1], [0], [0], [1], [0, 0, 1, 1], [], []>} : vector<8x128xf32>, vector<128x128xf32>, vector<8x128xf32> -> vector<8x128xf32>
    %c0_3 = arith.constant 0 : index
    %c0_4 = arith.constant 0 : index
    %3 = vector.load %arg3[%c0_3, %c0_4] : memref<8x128xf32, #tpu.memory_space<vmem>>, vector<1x128xf32>
    %4 = vector.broadcast %3 : vector<1x128xf32> to vector<8x128xf32>
    %5 = arith.addf %2, %4 : vector<8x128xf32>
    %cst_5 = arith.constant 0.000000e+00 : f32
    %6 = vector.broadcast %cst_5 : f32 to vector<8x128xf32>
    %7 = arith.maximumf %5, %6 : vector<8x128xf32>
    %c128 = arith.constant 128 : index
    %c0_6 = arith.constant 0 : index
    %8 = vector.load %arg2[%c128, %c0_6] : memref<384x128xf32, #tpu.memory_space<vmem>>, vector<128x128xf32>
    %cst_7 = arith.constant dense<0.000000e+00> : vector<8x128xf32>
    %9 = tpu.matmul %7, %8, %cst_7 {dimension_numbers = #tpu.dot_dimension_numbers<[1], [0], [0], [1], [0, 0, 1, 1], [], []>} : vector<8x128xf32>, vector<128x128xf32>, vector<8x128xf32> -> vector<8x128xf32>
    %c1 = arith.constant 1 : index
    %c0_8 = arith.constant 0 : index
    %10 = vector.load %arg3[%c1, %c0_8] : memref<8x128xf32, #tpu.memory_space<vmem>>, vector<1x128xf32>
    %11 = vector.broadcast %10 : vector<1x128xf32> to vector<8x128xf32>
    %12 = arith.addf %9, %11 : vector<8x128xf32>
    %cst_9 = arith.constant 0.000000e+00 : f32
    %13 = vector.broadcast %cst_9 : f32 to vector<8x128xf32>
    %14 = arith.maximumf %12, %13 : vector<8x128xf32>
    %c256 = arith.constant 256 : index
    %c0_10 = arith.constant 0 : index
    %15 = vector.load %arg2[%c256, %c0_10] : memref<384x128xf32, #tpu.memory_space<vmem>>, vector<128x128xf32>
    %cst_11 = arith.constant dense<0.000000e+00> : vector<8x128xf32>
    %16 = tpu.matmul %14, %15, %cst_11 {dimension_numbers = #tpu.dot_dimension_numbers<[1], [0], [0], [1], [0, 0, 1, 1], [], []>} : vector<8x128xf32>, vector<128x128xf32>, vector<8x128xf32> -> vector<8x128xf32>
    %c2 = arith.constant 2 : index
    %c0_12 = arith.constant 0 : index
    %17 = vector.load %arg3[%c2, %c0_12] : memref<8x128xf32, #tpu.memory_space<vmem>>, vector<1x128xf32>
    %18 = vector.broadcast %17 : vector<1x128xf32> to vector<8x128xf32>
    %19 = arith.addf %16, %18 : vector<8x128xf32>
    %c0_13 = arith.constant 0 : index
    %c0_14 = arith.constant 0 : index
    %20 = vector.load %arg4[%c0_13, %c0_14] : memref<8x128xf32, #tpu.memory_space<vmem>>, vector<8x128xf32>
    tpu.vector_store %arg4[%c0_13, %c0_14], %19 {strides = array<i32>} : memref<8x128xf32, #tpu.memory_space<vmem>>, vector<8x128xf32>,
    return
  }
  func.func @transform_0(%arg0: i32) -> (i32, i32) {
    %c0_i32 = arith.constant 0 : i32
    %c0_i32_0 = arith.constant 0 : i32
    return %arg0, %c0_i32 : i32, i32
  }
  func.func @transform_1(%arg0: i32) -> (i32, i32) {
    %c0_i32 = arith.constant 0 : i32
    %c0_i32_0 = arith.constant 0 : i32
    %c0_i32_1 = arith.constant 0 : i32
    return %c0_i32, %c0_i32_0 : i32, i32
  }
  func.func @transform_2(%arg0: i32) -> (i32, i32) {
    %c0_i32 = arith.constant 0 : i32
    %c0_i32_0 = arith.constant 0 : i32
    %c0_i32_1 = arith.constant 0 : i32
    return %c0_i32, %c0_i32_0 : i32, i32
  }
  func.func @transform_3(%arg0: i32) -> (i32, i32) {
    %c0_i32 = arith.constant 0 : i32
    %c0_i32_0 = arith.constant 0 : i32
    return %arg0, %c0_i32 : i32, i32
  }
}

</mosaic_0001>

<llo_original>
// kernel: tpu_custom_call.1
$region0: #{tpu_custom_call.1}
  #allocation0 [shape = 'u32[]', space=smem, size = 0x4, offset = 0x4, fixed_abs, tag = 'smem constant byte address 0x4 - core index']
  #allocation1 [shape = 'u32[144,128]{1,0:T(1,128)}', space=vmem, size = 0x12000, scoped, tag = 'internal scratch']
  %s0 = inlined_call_operand.hbm [shape: f32[8,128], index: 0, kind: input, shape index: {}]
  %s1 = inlined_call_operand.hbm [shape: f32[384,128], index: 1, kind: input, shape index: {}]
  %s2 = inlined_call_operand.hbm [shape: f32[8,128], index: 2, kind: input, shape index: {}]
  %s3 = inlined_call_operand.hbm [shape: f32[8,128], index: 3, kind: output, shape index: {}]
  %s4 = sld [smem:[#allocation0]]
  $region34: #{tpu_custom_call.1} parent=0
    _
  %s6 = ssub.s32 1, %s4
  %s7 = scalar_select 0, %s6, %s4
  $region1: #{tpu_custom_call.1} parent=0
    #allocation2 [shape = 'u8[4096]{0}', space=vmem, size = 0x1000, scoped, tag = 'input window, operand 0, single buffered']
    #allocation3 [shape = 's32[1]{0}', space=sflag, size = 0x4, scoped, tag = 'scoped memory for tpu_custom_call.1']
    #allocation4 [shape = 's32[1]{0}', space=sflag, size = 0x4, scoped, tag = 'scoped memory for tpu_custom_call.1']
    #allocation5 [shape = 'u8[196608]{0}', space=vmem, size = 0x30000, scoped, tag = 'input window, operand 1, single buffered']
    #allocation6 [shape = 's32[1]{0}', space=sflag, size = 0x4, scoped, tag = 'scoped memory for tpu_custom_call.1']
    #allocation7 [shape = 'u8[4096]{0}', space=vmem, size = 0x1000, scoped, tag = 'input window, operand 2, single buffered']
    #allocation8 [shape = 'u8[4096]{0}', space=vmem, size = 0x1000, scoped, tag = 'output window, operand 0, single buffered']
    %8 = vsyncpa [#allocation3], 0
    %9 = vsyncpa [#allocation6], 0
    %10 = vsyncpa [#allocation4], 0
    // Predicated region
    $region2: #{tpu_custom_call.1} parent=1 // pred_check
      _
    $region3: #{tpu_custom_call.1} parent=1 // pred_check_branch
      %12 = sbr.rel (0) target = $region5
    $region4: #{tpu_custom_call.1} parent=1 // pred_region
      %s14 = ssub.s32 128, 128
      %15 = vsyncadd [#allocation3], %s14
      %s17 = sshll.u32 [#allocation2], 4
      %s18 = int_to_ptr.vmem [resolvable:$true] %s17
      %20 = dma.hbm_to_vmem [thread:$0]  %s0, 128, %s18, [#allocation3]
    $region5: #{tpu_custom_call.1} parent=1 // pred_fallthru
      _
    // Predicated region
    $region6: #{tpu_custom_call.1} parent=1 // pred_check
      _
    $region7: #{tpu_custom_call.1} parent=1 // pred_check_branch
      %22 = sbr.rel (0) target = $region9
    $region8: #{tpu_custom_call.1} parent=1 // pred_region
      %s24 = ssub.s32 6144, 6144
      %25 = vsyncadd [#allocation6], %s24
      %s26 = sshll.u32 [#allocation5], 4
      %s27 = int_to_ptr.vmem [resolvable:$true] %s26
      %32 = dma.hbm_to_vmem [thread:$0]  %s1, 6144, %s27, [#allocation6], 128, 128, 8
    $region9: #{tpu_custom_call.1} parent=1 // pred_fallthru
      _
    // Predicated region
    $region10: #{tpu_custom_call.1} parent=1 // pred_check
      _
    $region11: #{tpu_custom_call.1} parent=1 // pred_check_branch
      %34 = sbr.rel (0) target = $region13
    $region12: #{tpu_custom_call.1} parent=1 // pred_region
      %s36 = ssub.s32 128, 128
      %37 = vsyncadd [#allocation6], %s36
      %s39 = sshll.u32 [#allocation7], 4
      %s40 = int_to_ptr.vmem [resolvable:$true] %s39
      %42 = dma.hbm_to_vmem [thread:$0]  %s2, 128, %s40, [#allocation6]
    $region13: #{tpu_custom_call.1} parent=1 // pred_fallthru
      _
    // Predicated region
    $region14: #{tpu_custom_call.1} parent=1 // pred_check
      _
    $region15: #{tpu_custom_call.1} parent=1 // pred_check_branch
      %44 = sbr.rel (0) target = $region17
    $region16: #{tpu_custom_call.1} parent=1 // pred_region
      %45 = dma.done [#allocation3], 128
    $region17: #{tpu_custom_call.1} parent=1 // pred_fallthru
      _
    // Predicated region
    $region18: #{tpu_custom_call.1} parent=1 // pred_check
      _
    $region19: #{tpu_custom_call.1} parent=1 // pred_check_branch
      %47 = sbr.rel (0) target = $region21
    $region20: #{tpu_custom_call.1} parent=1 // pred_region
      %48 = dma.done [#allocation6], 6144
    $region21: #{tpu_custom_call.1} parent=1 // pred_fallthru
      _
    // Predicated region
    $region22: #{tpu_custom_call.1} parent=1 // pred_check
      _
    $region23: #{tpu_custom_call.1} parent=1 // pred_check_branch
      %50 = sbr.rel (0) target = $region25
    $region24: #{tpu_custom_call.1} parent=1 // pred_region
      %51 = dma.done [#allocation6], 128
    $region25: #{tpu_custom_call.1} parent=1 // pred_fallthru
      _
    %v52 = vld [vmem:[#allocation2] sm:$0xff]
    %v53 = vld [vmem:[#allocation5] sm:$0xff]
    %v54 = vld [vmem:[#allocation5 + $0x8] sm:$0xff]
    %v55 = vld [vmem:[#allocation5 + $0x10] sm:$0xff]
    %v56 = vld [vmem:[#allocation5 + $0x18] sm:$0xff]
    %v57 = vld [vmem:[#allocation5 + $0x20] sm:$0xff]
    %v58 = vld [vmem:[#allocation5 + $0x28] sm:$0xff]
    %v59 = vld [vmem:[#allocation5 + $0x30] sm:$0xff]
    %v60 = vld [vmem:[#allocation5 + $0x38] sm:$0xff]
    %v61 = vld [vmem:[#allocation5 + $0x40] sm:$0xff]
    %v62 = vld [vmem:[#allocation5 + $0x48] sm:$0xff]
    %v63 = vld [vmem:[#allocation5 + $0x50] sm:$0xff]
    %v64 = vld [vmem:[#allocation5 + $0x58] sm:$0xff]
    %v65 = vld [vmem:[#allocation5 + $0x60] sm:$0xff]
    %v66 = vld [vmem:[#allocation5 + $0x68] sm:$0xff]
    %v67 = vld [vmem:[#allocation5 + $0x70] sm:$0xff]
    %v68 = vld [vmem:[#allocation5 + $0x78] sm:$0xff]
    %v69 = vld [vmem:[#allocation7] sm:$0x1]
    %v70 = vlaneseq
    %v71 = vshrl.u32 %v70, 7
    %v72 = vsub.s32 0, %v71
    %v73 = vrot.slane %v69, %v72
    %74 = vmatprep.subr.mxu0 0.0
    %75 = vmatpush1.msra.mxu0 %v68
    %76 = vmatprep.subr.mxu0 0.0
    %77 = vmatpush1.msra.mxu0 %v67
    %78 = vmatprep.subr.mxu0 0.0
    %79 = vmatpush1.msra.mxu0 %v66
    %80 = vmatprep.subr.mxu0 0.0
    %81 = vmatpush1.msra.mxu0 %v65
    %82 = vmatprep.subr.mxu0 0.0
    %83 = vmatpush1.msra.mxu0 %v64
    %84 = vmatprep.subr.mxu0 0.0
    %85 = vmatpush1.msra.mxu0 %v63
    %86 = vmatprep.subr.mxu0 0.0
    %87 = vmatpush1.msra.mxu0 %v62
    %88 = vmatprep.subr.mxu0 0.0
    %89 = vmatpush1.msra.mxu0 %v61
    %90 = vmatprep.subr.mxu0 0.0
    %91 = vmatpush1.msra.mxu0 %v60
    %92 = vmatprep.subr.mxu0 0.0
    %93 = vmatpush1.msra.mxu0 %v59
    %94 = vmatprep.subr.mxu0 0.0
    %95 = vmatpush1.msra.mxu0 %v58
    %96 = vmatprep.subr.mxu0 0.0
    %97 = vmatpush1.msra.mxu0 %v57
    %98 = vmatprep.subr.mxu0 0.0
    %99 = vmatpush1.msra.mxu0 %v56
    %100 = vmatprep.subr.mxu0 0.0
    %101 = vmatpush1.msra.mxu0 %v55
    %102 = vmatprep.subr.mxu0 0.0
    %103 = vmatpush1.msra.mxu0 %v54
    %104 = vmatprep.subr.mxu0 0.0
    %105 = vmatpush1.msra.mxu0 %v53
    %106 = vmatprep.subr.mxu0 0.0
    %107 = vmatpush2.msra.mxu0 0.0
    %108 = vmatprep.subr.mxu0 0.0
    %109 = vmatpush2.msra.mxu0 0.0
    %110 = vmatprep.subr.mxu0 0.0
    %111 = vmatpush2.msra.mxu0 0.0
    %112 = vmatprep.subr.mxu0 0.0
    %113 = vmatpush2.msra.mxu0 0.0
    %114 = vmatprep.subr.mxu0 0.0
    %115 = vmatpush2.msra.mxu0 0.0
    %116 = vmatprep.subr.mxu0 0.0
    %117 = vmatpush2.msra.mxu0 0.0
    %118 = vmatprep.subr.mxu0 0.0
    %119 = vmatpush2.msra.mxu0 0.0
    %120 = vmatprep.subr.mxu0 0.0
    %121 = vmatpush2.msra.mxu0 0.0
    %122 = vmatprep.subr.mxu0 0.0
    %123 = vmatpush2.msra.mxu0 0.0
    %124 = vmatprep.subr.mxu0 0.0
    %125 = vmatpush2.msra.mxu0 0.0
    %126 = vmatprep.subr.mxu0 0.0
    %127 = vmatpush2.msra.mxu0 0.0
    %128 = vmatprep.subr.mxu0 0.0
    %129 = vmatpush2.msra.mxu0 0.0
    %130 = vmatprep.subr.mxu0 0.0
    %131 = vmatpush2.msra.mxu0 0.0
    %132 = vmatprep.subr.mxu0 0.0
    %133 = vmatpush2.msra.mxu0 0.0
    %134 = vmatprep.subr.mxu0 0.0
    %135 = vmatpush2.msra.mxu0 0.0
    %136 = vmatprep.subr.mxu0 0.0
    %137 = vmatpush2.msra.mxu0 0.0
    %138 = vmatprep.mubr.f32.mxu0 0.0
    %139 = vmatmul.mubr.f32.gmra.mxu0 %v52
    %v140 = vpop.f32.mrf.mxu0
    %v141 = vadd.f32 %v73, %v140
    %v142 = vpop.f32.mrf.mxu0
    %143 = vdwg.mxu0
    %v144 = vmax.f32 %v141, 0.0
    %v145 = vld [vmem:[#allocation5 + $0x80] sm:$0xff]
    %v146 = vld [vmem:[#allocation5 + $0x88] sm:$0xff]
    %v147 = vld [vmem:[#allocation5 + $0x90] sm:$0xff]
    %v148 = vld [vmem:[#allocation5 + $0x98] sm:$0xff]
    %v149 = vld [vmem:[#allocation5 + $0xa0] sm:$0xff]
    %v150 = vld [vmem:[#allocation5 + $0xa8] sm:$0xff]
    %v151 = vld [vmem:[#allocation5 + $0xb0] sm:$0xff]
    %v152 = vld [vmem:[#allocation5 + $0xb8] sm:$0xff]
    %v153 = vld [vmem:[#allocation5 + $0xc0] sm:$0xff]
    %v154 = vld [vmem:[#allocation5 + $0xc8] sm:$0xff]
    %v155 = vld [vmem:[#allocation5 + $0xd0] sm:$0xff]
    %v156 = vld [vmem:[#allocation5 + $0xd8] sm:$0xff]
    %v157 = vld [vmem:[#allocation5 + $0xe0] sm:$0xff]
    %v158 = vld [vmem:[#allocation5 + $0xe8] sm:$0xff]
    %v159 = vld [vmem:[#allocation5 + $0xf0] sm:$0xff]
    %v160 = vld [vmem:[#allocation5 + $0xf8] sm:$0xff]
    %v161 = vld [vmem:[#allocation7 + $0x1] sm:$0x1]
    %v162 = vlaneseq
    %v163 = vshrl.u32 %v162, 7
    %v164 = vsub.s32 0, %v163
    %v165 = vrot.slane %v161, %v164
    %166 = vmatprep.subr.mxu0 0.0
    %167 = vmatpush1.msra.mxu0 %v160
    %168 = vmatprep.subr.mxu0 0.0
    %169 = vmatpush1.msra.mxu0 %v159
    %170 = vmatprep.subr.mxu0 0.0
    %171 = vmatpush1.msra.mxu0 %v158
    %172 = vmatprep.subr.mxu0 0.0
    %173 = vmatpush1.msra.mxu0 %v157
    %174 = vmatprep.subr.mxu0 0.0
    %175 = vmatpush1.msra.mxu0 %v156
    %176 = vmatprep.subr.mxu0 0.0
    %177 = vmatpush1.msra.mxu0 %v155
    %178 = vmatprep.subr.mxu0 0.0
    %179 = vmatpush1.msra.mxu0 %v154
    %180 = vmatprep.subr.mxu0 0.0
    %181 = vmatpush1.msra.mxu0 %v153
    %182 = vmatprep.subr.mxu0 0.0
    %183 = vmatpush1.msra.mxu0 %v152
    %184 = vmatprep.subr.mxu0 0.0
    %185 = vmatpush1.msra.mxu0 %v151
    %186 = vmatprep.subr.mxu0 0.0
    %187 = vmatpush1.msra.mxu0 %v150
    %188 = vmatprep.subr.mxu0 0.0
    %189 = vmatpush1.msra.mxu0 %v149
    %190 = vmatprep.subr.mxu0 0.0
    %191 = vmatpush1.msra.mxu0 %v148
    %192 = vmatprep.subr.mxu0 0.0
    %193 = vmatpush1.msra.mxu0 %v147
    %194 = vmatprep.subr.mxu0 0.0
    %195 = vmatpush1.msra.mxu0 %v146
    %196 = vmatprep.subr.mxu0 0.0
    %197 = vmatpush1.msra.mxu0 %v145
    %198 = vmatprep.subr.mxu0 0.0
    %199 = vmatpush2.msra.mxu0 0.0
    %200 = vmatprep.subr.mxu0 0.0
    %201 = vmatpush2.msra.mxu0 0.0
    %202 = vmatprep.subr.mxu0 0.0
    %203 = vmatpush2.msra.mxu0 0.0
    %204 = vmatprep.subr.mxu0 0.0
    %205 = vmatpush2.msra.mxu0 0.0
    %206 = vmatprep.subr.mxu0 0.0
    %207 = vmatpush2.msra.mxu0 0.0
    %208 = vmatprep.subr.mxu0 0.0
    %209 = vmatpush2.msra.mxu0 0.0
    %210 = vmatprep.subr.mxu0 0.0
    %211 = vmatpush2.msra.mxu0 0.0
    %212 = vmatprep.subr.mxu0 0.0
    %213 = vmatpush2.msra.mxu0 0.0
    %214 = vmatprep.subr.mxu0 0.0
    %215 = vmatpush2.msra.mxu0 0.0
    %216 = vmatprep.subr.mxu0 0.0
    %217 = vmatpush2.msra.mxu0 0.0
    %218 = vmatprep.subr.mxu0 0.0
    %219 = vmatpush2.msra.mxu0 0.0
    %220 = vmatprep.subr.mxu0 0.0
    %221 = vmatpush2.msra.mxu0 0.0
    %222 = vmatprep.subr.mxu0 0.0
    %223 = vmatpush2.msra.mxu0 0.0
    %224 = vmatprep.subr.mxu0 0.0
    %225 = vmatpush2.msra.mxu0 0.0
    %226 = vmatprep.subr.mxu0 0.0
    %227 = vmatpush2.msra.mxu0 0.0
    %228 = vmatprep.subr.mxu0 0.0
    %229 = vmatpush2.msra.mxu0 0.0
    %230 = vmatprep.mubr.f32.mxu0 0.0
    %231 = vmatmul.mubr.f32.gmra.mxu0 %v144
    %v232 = vpop.f32.mrf.mxu0
    %v233 = vadd.f32 %v165, %v232
    %v234 = vpop.f32.mrf.mxu0
    %235 = vdwg.mxu0
    %v236 = vmax.f32 %v233, 0.0
    %v237 = vld [vmem:[#allocation5 + $0x100] sm:$0xff]
    %v238 = vld [vmem:[#allocation5 + $0x108] sm:$0xff]
    %v239 = vld [vmem:[#allocation5 + $0x110] sm:$0xff]
    %v240 = vld [vmem:[#allocation5 + $0x118] sm:$0xff]
    %v241 = vld [vmem:[#allocation5 + $0x120] sm:$0xff]
    %v242 = vld [vmem:[#allocation5 + $0x128] sm:$0xff]
    %v243 = vld [vmem:[#allocation5 + $0x130] sm:$0xff]
    %v244 = vld [vmem:[#allocation5 + $0x138] sm:$0xff]
    %v245 = vld [vmem:[#allocation5 + $0x140] sm:$0xff]
    %v246 = vld [vmem:[#allocation5 + $0x148] sm:$0xff]
    %v247 = vld [vmem:[#allocation5 + $0x150] sm:$0xff]
    %v248 = vld [vmem:[#allocation5 + $0x158] sm:$0xff]
    %v249 = vld [vmem:[#allocation5 + $0x160] sm:$0xff]
    %v250 = vld [vmem:[#allocation5 + $0x168] sm:$0xff]
    %v251 = vld [vmem:[#allocation5 + $0x170] sm:$0xff]
    %v252 = vld [vmem:[#allocation5 + $0x178] sm:$0xff]
    %v253 = vld [vmem:[#allocation7 + $0x2] sm:$0x1]
    %v254 = vlaneseq
    %v255 = vshrl.u32 %v254, 7
    %v256 = vsub.s32 0, %v255
    %v257 = vrot.slane %v253, %v256
    %258 = vmatprep.subr.mxu0 0.0
    %259 = vmatpush1.msra.mxu0 %v252
    %260 = vmatprep.subr.mxu0 0.0
    %261 = vmatpush1.msra.mxu0 %v251
    %262 = vmatprep.subr.mxu0 0.0
    %263 = vmatpush1.msra.mxu0 %v250
    %264 = vmatprep.subr.mxu0 0.0
    %265 = vmatpush1.msra.mxu0 %v249
    %266 = vmatprep.subr.mxu0 0.0
    %267 = vmatpush1.msra.mxu0 %v248
    %268 = vmatprep.subr.mxu0 0.0
    %269 = vmatpush1.msra.mxu0 %v247
    %270 = vmatprep.subr.mxu0 0.0
    %271 = vmatpush1.msra.mxu0 %v246
    %272 = vmatprep.subr.mxu0 0.0
    %273 = vmatpush1.msra.mxu0 %v245
    %274 = vmatprep.subr.mxu0 0.0
    %275 = vmatpush1.msra.mxu0 %v244
    %276 = vmatprep.subr.mxu0 0.0
    %277 = vmatpush1.msra.mxu0 %v243
    %278 = vmatprep.subr.mxu0 0.0
    %279 = vmatpush1.msra.mxu0 %v242
    %280 = vmatprep.subr.mxu0 0.0
    %281 = vmatpush1.msra.mxu0 %v241
    %282 = vmatprep.subr.mxu0 0.0
    %283 = vmatpush1.msra.mxu0 %v240
    %284 = vmatprep.subr.mxu0 0.0
    %285 = vmatpush1.msra.mxu0 %v239
    %286 = vmatprep.subr.mxu0 0.0
    %287 = vmatpush1.msra.mxu0 %v238
    %288 = vmatprep.subr.mxu0 0.0
    %289 = vmatpush1.msra.mxu0 %v237
    %290 = vmatprep.subr.mxu0 0.0
    %291 = vmatpush2.msra.mxu0 0.0
    %292 = vmatprep.subr.mxu0 0.0
    %293 = vmatpush2.msra.mxu0 0.0
    %294 = vmatprep.subr.mxu0 0.0
    %295 = vmatpush2.msra.mxu0 0.0
    %296 = vmatprep.subr.mxu0 0.0
    %297 = vmatpush2.msra.mxu0 0.0
    %298 = vmatprep.subr.mxu0 0.0
    %299 = vmatpush2.msra.mxu0 0.0
    %300 = vmatprep.subr.mxu0 0.0
    %301 = vmatpush2.msra.mxu0 0.0
    %302 = vmatprep.subr.mxu0 0.0
    %303 = vmatpush2.msra.mxu0 0.0
    %304 = vmatprep.subr.mxu0 0.0
    %305 = vmatpush2.msra.mxu0 0.0
    %306 = vmatprep.subr.mxu0 0.0
    %307 = vmatpush2.msra.mxu0 0.0
    %308 = vmatprep.subr.mxu0 0.0
    %309 = vmatpush2.msra.mxu0 0.0
    %310 = vmatprep.subr.mxu0 0.0
    %311 = vmatpush2.msra.mxu0 0.0
    %312 = vmatprep.subr.mxu0 0.0
    %313 = vmatpush2.msra.mxu0 0.0
    %314 = vmatprep.subr.mxu0 0.0
    %315 = vmatpush2.msra.mxu0 0.0
    %316 = vmatprep.subr.mxu0 0.0
    %317 = vmatpush2.msra.mxu0 0.0
    %318 = vmatprep.subr.mxu0 0.0
    %319 = vmatpush2.msra.mxu0 0.0
    %320 = vmatprep.subr.mxu0 0.0
    %321 = vmatpush2.msra.mxu0 0.0
    %322 = vmatprep.mubr.f32.mxu0 0.0
    %323 = vmatmul.mubr.f32.gmra.mxu0 %v236
    %v324 = vpop.f32.mrf.mxu0
    %v325 = vadd.f32 %v257, %v324
    %v326 = vpop.f32.mrf.mxu0
    %327 = vdwg.mxu0
    %328 = vst [vmem:[#allocation8] sm:$0xff] %v325
    // Predicated region
    $region26: #{tpu_custom_call.1} parent=1 // pred_check
      _
    $region27: #{tpu_custom_call.1} parent=1 // pred_check_branch
      %330 = sbr.rel (0) target = $region29
    $region28: #{tpu_custom_call.1} parent=1 // pred_region
      %s332 = ssub.s32 128, 128
      %333 = vsyncadd [#allocation4], %s332
      %s335 = sshll.u32 [#allocation8], 4
      %s336 = int_to_ptr.vmem [resolvable:$true] %s335
      %338 = dma.vmem_to_hbm [thread:$0]  %s336, 128, %s3, [#allocation4]
    $region29: #{tpu_custom_call.1} parent=1 // pred_fallthru
      _
    // Predicated region
    $region30: #{tpu_custom_call.1} parent=1 // pred_check
      _
    $region31: #{tpu_custom_call.1} parent=1 // pred_check_branch
      %340 = sbr.rel (0) target = $region33
    $region32: #{tpu_custom_call.1} parent=1 // pred_region
      %341 = dma.done [#allocation4], 128
    $region33: #{tpu_custom_call.1} parent=1 // pred_fallthru
      _
    %342 = vsyncpa [#allocation3], 1
    %343 = vsyncpa [#allocation6], 1
    %344 = vsyncpa [#allocation4], 1

</llo_original>
